<compile_context>
chip_gen: v6e
topology: v6e:2x2x1
jax: 0.10.0
libtpu: 0.0.40
codegen_flags: <defaults>
</compile_context>

<pallas_src>
import functools

import jax
import jax.numpy as jnp
from jax.experimental import pallas as pl
from jax.experimental.pallas import tpu as pltpu


def _max_prob_kernel(x_ref, out_ref, *, cls_id, num_cls, loss_type):
    # x_ref block: (Bt, 5, 5+num_cls, h*w) in the native head layout / dtype.
    # Channels: 0..3 box coords (unused), 4 objectness, 5..5+num_cls classes.
    obj_logit = x_ref[:, :, 4:5, :].astype(jnp.float32)            # (Bt,5,1,hw)
    cls_logits = x_ref[:, :, 5:5 + num_cls, :].astype(jnp.float32)  # (Bt,5,nc,hw)

    # objectness, sigmoid-normalised
    obj = jax.nn.sigmoid(obj_logit)                                 # (Bt,5,1,hw)

    # softmax over the class (sublane) axis, numerically stable
    m = jnp.max(cls_logits, axis=2, keepdims=True)                  # (Bt,5,1,hw)
    e = jnp.exp(cls_logits - m)                                     # (Bt,5,nc,hw)
    denom = jnp.sum(e, axis=2, keepdims=True)                       # (Bt,5,1,hw)
    p_cls = e[:, :, cls_id:cls_id + 1, :] * pl.reciprocal(denom, approx=True)

    # config.loss_target(obj, cls) = obj * cls
    conf = obj * p_cls                                              # (Bt,5,1,hw)

    if loss_type == "max_approach":
        r = jnp.max(conf, axis=3, keepdims=True)                    # (Bt,5,1,1)
        r = jnp.max(r, axis=1, keepdims=True)                       # (Bt,1,1,1)
    else:  # "threshold_approach"
        pen = jnp.maximum(conf - jnp.float32(0.3), jnp.float32(0.0))
        pen = pen * pen
        r = jnp.sum(pen, axis=3, keepdims=True)                     # (Bt,5,1,1)
        r = jnp.sum(r, axis=1, keepdims=True)                       # (Bt,1,1,1)

    out_ref[...] = r


def yolov2_feature_output_manage(yolo_output, *, cls_id, num_cls,
                                 loss_type="max_approach"):
    """JAX/Pallas equivalent of the PyTorch module's forward."""
    if loss_type not in ("max_approach", "threshold_approach"):
        raise ValueError(f"unknown loss_type: {loss_type}")

    if yolo_output.ndim == 3:
        yolo_output = yolo_output[None]            # unsqueeze(0)
    B, c_all, h, w = yolo_output.shape
    C = 5 + num_cls
    assert c_all == C * 5
    hw = h * w

    # Free, contiguous reshape of the NCHW head output — no transpose, no cast.
    x = yolo_output.reshape(B, 5, C, hw)

    # Batch tile: amortize per-grid-step overhead, keep >=2 grid steps when
    # B >= 2 (v7x has 2 TensorCores), and keep the double-buffered input
    # block comfortably inside scoped VMEM on all generations.
    bytes_per_img = 5 * C * hw * x.dtype.itemsize
    vmem_cap_bt = max(1, (8 * 1024 * 1024) // max(1, 2 * bytes_per_img))
    bt = max(1, min(8, B // 2 if B >= 2 else 1, vmem_cap_bt))
    grid = pl.cdiv(B, bt)

    kernel = functools.partial(_max_prob_kernel, cls_id=cls_id,
                               num_cls=num_cls, loss_type=loss_type)

    out = pl.pallas_call(
        kernel,
        out_shape=jax.ShapeDtypeStruct((B, 1, 1, 1), jnp.float32),
        grid_spec=pltpu.PrefetchScalarGridSpec(
            num_scalar_prefetch=0,
            grid=(grid,),
            in_specs=[pl.BlockSpec((bt, 5, C, hw), lambda b: (b, 0, 0, 0))],
            out_specs=pl.BlockSpec((bt, 1, 1, 1), lambda b: (b, 0, 0, 0)),
        ),
        compiler_params=pltpu.CompilerParams(
            dimension_semantics=("parallel",),
            vmem_limit_bytes=32 * 1024 * 1024,
        ),
    )(x)

    return out.reshape(B)


def _reference(yolo_output, cls_id, num_cls, loss_type):
    """Pure-JAX reference mirroring the PyTorch semantics."""
    B, c_all, h, w = yolo_output.shape
    C = 5 + num_cls
    out = yolo_output.reshape(B, 5, C, h * w)
    out = jnp.transpose(out, (0, 2, 1, 3)).reshape(B, C, 5 * h * w)
    out = out.astype(jnp.float32)
    obj = jax.nn.sigmoid(out[:, 4, :])
    cls = jax.nn.softmax(out[:, 5:5 + num_cls, :], axis=1)[:, cls_id, :]
    conf = obj * cls                               # loss_target = obj * cls
    if loss_type == "max_approach":
        return jnp.max(conf, axis=1)
    return jnp.sum(jnp.maximum(conf - 0.3, 0.0) ** 2, axis=1)


if __name__ == "__main__":
    # Small synthetic YOLOv2 head output: batch=2, num_cls=3 -> 5*(5+3)=40 ch,
    # spatial 8x8.
    cls_id, num_cls = 0, 3
    B, h, w = 2, 8, 8
    key = jax.random.PRNGKey(0)
    yolo_out = jax.random.normal(
        key, (B, 5 * (5 + num_cls), h, w), dtype=jnp.float32)

    out_max = yolov2_feature_output_manage(
        yolo_out, cls_id=cls_id, num_cls=num_cls, loss_type="max_approach")
    out_thr = yolov2_feature_output_manage(
        yolo_out, cls_id=cls_id, num_cls=num_cls, loss_type="threshold_approach")
    jax.block_until_ready((out_max, out_thr))

    ref_max = _reference(yolo_out, cls_id, num_cls, "max_approach")
    ref_thr = _reference(yolo_out, cls_id, num_cls, "threshold_approach")
    assert out_max.shape == (B,) and out_thr.shape == (B,)
    # Tolerance slightly loosened because the kernel uses the EUP approximate
    # reciprocal for the softmax denominator.
    assert jnp.allclose(out_max, ref_max, atol=5e-3, rtol=5e-3)
    assert jnp.allclose(out_thr, ref_thr, atol=5e-3, rtol=5e-3)

    print("KERNEL_OK")
</pallas_src>

<mosaic_0001>
module attributes {stable_mosaic.version = 11 : i64} {
  func.func @_max_prob_kernel(%arg0: i32, %arg1: memref<1x5x8x64xf32, #tpu.memory_space<vmem>>, %arg2: memref<1x1x1x1xf32, #tpu.memory_space<vmem>>) attributes {dimension_semantics = [#tpu.dimension_semantics<parallel>], iteration_bounds = array<i64: 2>, scalar_prefetch = 0 : i64, scratch_operands = 0 : i64, tpu.core_type = #tpu.core_type<tc>, window_params = [{transform_indices = @transform_0, window_bounds = array<i64: 1, 5, 8, 64>}, {transform_indices = @transform_1, window_bounds = array<i64: 1, 1, 1, 1>}]} {
    %c0 = arith.constant 0 : index
    %c0_0 = arith.constant 0 : index
    %c4 = arith.constant 4 : index
    %c0_1 = arith.constant 0 : index
    %0 = vector.load %arg1[%c0, %c0_0, %c4, %c0_1] : memref<1x5x8x64xf32, #tpu.memory_space<vmem>>, vector<1x5x1x64xf32>
    %c0_2 = arith.constant 0 : index
    %c0_3 = arith.constant 0 : index
    %c5 = arith.constant 5 : index
    %c0_4 = arith.constant 0 : index
    %1 = vector.load %arg1[%c0_2, %c0_3, %c5, %c0_4] : memref<1x5x8x64xf32, #tpu.memory_space<vmem>>, vector<1x5x3x64xf32>
    %2 = arith.negf %0 : vector<1x5x1x64xf32>
    %3 = math.exp %2 : vector<1x5x1x64xf32>
    %cst = arith.constant 1.000000e+00 : f32
    %4 = vector.broadcast %cst : f32 to vector<1x5x1x64xf32>
    %5 = arith.addf %4, %3 : vector<1x5x1x64xf32>
    %6 = arith.divf %4, %5 : vector<1x5x1x64xf32>
    %cst_5 = arith.constant dense<0xFF800000> : vector<1x5x64xf32>
    %7 = vector.multi_reduction <maximumf>, %1, %cst_5 [2] : vector<1x5x3x64xf32> to vector<1x5x64xf32>
    %8 = vector.shape_cast %7 : vector<1x5x64xf32> to vector<1x5x1x64xf32>
    %9 = vector.broadcast %8 : vector<1x5x1x64xf32> to vector<1x5x3x64xf32>
    %10 = arith.subf %1, %9 : vector<1x5x3x64xf32>
    %11 = math.exp %10 : vector<1x5x3x64xf32>
    %cst_6 = arith.constant dense<0.000000e+00> : vector<1x5x64xf32>
    %12 = vector.multi_reduction <add>, %11, %cst_6 [2] : vector<1x5x3x64xf32> to vector<1x5x64xf32>
    %13 = vector.shape_cast %12 : vector<1x5x64xf32> to vector<1x5x1x64xf32>
    %14 = vector.extract_strided_slice %11 {offsets = [0, 0, 0, 0], sizes = [1, 5, 1, 64], strides = [1, 1, 1, 1]} : vector<1x5x3x64xf32> to vector<1x5x1x64xf32>
    %15 = tpu.reciprocal %13 {approx = true} : vector<1x5x1x64xf32> -> vector<1x5x1x64xf32>
    %16 = arith.mulf %14, %15 : vector<1x5x1x64xf32>
    %17 = arith.mulf %6, %16 : vector<1x5x1x64xf32>
    %cst_7 = arith.constant dense<0xFF800000> : vector<1x5x1xf32>
    %18 = vector.multi_reduction <maximumf>, %17, %cst_7 [3] : vector<1x5x1x64xf32> to vector<1x5x1xf32>
    %19 = vector.shape_cast %18 : vector<1x5x1xf32> to vector<1x5x1x1xf32>
    %cst_8 = arith.constant dense<0xFF800000> : vector<1x1x1xf32>
    %20 = vector.multi_reduction <maximumf>, %19, %cst_8 [1] : vector<1x5x1x1xf32> to vector<1x1x1xf32>
    %21 = vector.shape_cast %20 : vector<1x1x1xf32> to vector<1x1x1x1xf32>
    %c0_9 = arith.constant 0 : index
    %c0_10 = arith.constant 0 : index
    %c0_11 = arith.constant 0 : index
    %c0_12 = arith.constant 0 : index
    %22 = vector.load %arg2[%c0_9, %c0_10, %c0_11, %c0_12] : memref<1x1x1x1xf32, #tpu.memory_space<vmem>>, vector<1x1x1x1xf32>
    tpu.vector_store %arg2[%c0_9, %c0_10, %c0_11, %c0_12], %21 {strides = array<i32>} : memref<1x1x1x1xf32, #tpu.memory_space<vmem>>, vector<1x1x1x1xf32>,
    return
  }
  func.func @transform_0(%arg0: i32) -> (i32, i32, i32, i32) {
    %c0_i32 = arith.constant 0 : i32
    %c0_i32_0 = arith.constant 0 : i32
    %c0_i32_1 = arith.constant 0 : i32
    %c0_i32_2 = arith.constant 0 : i32
    return %arg0, %c0_i32, %c0_i32_0, %c0_i32_1 : i32, i32, i32, i32
  }
  func.func @transform_1(%arg0: i32) -> (i32, i32, i32, i32) {
    %c0_i32 = arith.constant 0 : i32
    %c0_i32_0 = arith.constant 0 : i32
    %c0_i32_1 = arith.constant 0 : i32
    %c0_i32_2 = arith.constant 0 : i32
    return %arg0, %c0_i32, %c0_i32_0, %c0_i32_1 : i32, i32, i32, i32
  }
}

</mosaic_0001>

<llo_original>
// kernel: tpu_custom_call.1
$region0: #{tpu_custom_call.1}
  #allocation0 [shape = 'u32[]', space=smem, size = 0x4, offset = 0x4, fixed_abs, tag = 'smem constant byte address 0x4 - core index']
  #allocation1 [shape = 'u32[144,128]{1,0:T(1,128)}', space=vmem, size = 0x12000, scoped, tag = 'internal scratch']
  %s0 = inlined_call_operand.hbm [shape: f32[2,5,8,64], index: 0, kind: input, shape index: {}]
  %s1 = inlined_call_operand.vmem [shape: f32[2,1,1,1], index: 1, kind: output, shape index: {}]
  %s2 = sld [smem:[#allocation0]]
  $region41: #{tpu_custom_call.1} parent=0
    _
  %s4 = ssub.s32 1, %s2
  %s5 = scalar_select 0, %s4, %s2
  $region1: #{tpu_custom_call.1} parent=0
    #allocation2 [shape = 'u8[40960]{0}', space=vmem, size = 0xa000, scoped, tag = 'input window, operand 0']
    #allocation3 [shape = 's32[2]{0}', space=sflag, size = 0x8, scoped, tag = 'scoped memory for tpu_custom_call.1']
    %6 = vsyncpa [#allocation3], 0
    %s7 = scalar_lea.sflag [#allocation3], 1
    %8 = vsyncpa %s7, 0
    loop: start=0, step=1, limit=4
    $region2: #{tpu_custom_call.1} parent=1 // loop_pre_header
      _
    $region3: #{tpu_custom_call.1} parent=1 // loop_header
      %s10 = sphi 0, %s14
      %p11 = scmp.ge.s32.totalorder %s10, 4
      %s20 = sphi 0, %s22
      %s23 = sphi 0, %s20
      %s24 = sphi 0, %s23
      %s40 = sphi 0, %s24
      %s46 = sphi 0, %s48
      %s49 = sphi 0, %s46
      %s50 = sphi 0, %s49
      %s66 = sphi 0, %s50
    $region4: #{tpu_custom_call.1} parent=1 // loop_header_branch
      %13 = sbr.rel (%p11) target = $region8
    $region5: #{tpu_custom_call.1} parent=1 // loop_body
      %s15 = ssub.s32 %s10, 1
      %s16 = ssub.s32 %s10, 2
      %s17 = sadd.s32 %s10, 1
      %s18 = ssub.s32 %s10, %s17
      %p19 = scmp.eq.s32.totalorder %s18, 0
      %s21 = sadd.s32 %s20, 1
      %s22 = scalar_select %p19, %s20, %s21
      %p25 = pneg %p19
      %p26 = scmp.eq.s32.totalorder %s10, 1
      %p27 = por %p25, %p26
      %p28 = scmp.ne.s32.totalorder %s20, %s23
      %p29 = scmp.eq.s32.totalorder %s10, 0
      %p30 = por %p28, %p29
      %p31 = scmp.ne.s32.totalorder %s20, %s23
      %p32 = scmp.eq.s32.totalorder %s15, 1
      %p33 = por %p31, %p32
      %p34 = scmp.ne.s32.totalorder %s23, %s24
      %p35 = scmp.eq.s32.totalorder %s15, 0
      %p36 = por %p34, %p35
      %p37 = scmp.ne.s32.totalorder %s23, %s24
      %p38 = scmp.eq.s32.totalorder %s16, 1
      %p39 = por %p37, %p38
      %p41 = scmp.ne.s32.totalorder %s24, %s40
      %p42 = scmp.eq.s32.totalorder %s16, 0
      %p43 = por %p41, %p42
      %s44 = ssub.s32 %s10, %s17
      %p45 = scmp.eq.s32.totalorder %s44, 0
      %s47 = sadd.s32 %s46, 1
      %s48 = scalar_select %p45, %s46, %s47
      %p51 = pneg %p45
      %p52 = scmp.eq.s32.totalorder %s10, 1
      %p53 = por %p51, %p52
      %p54 = scmp.ne.s32.totalorder %s46, %s49
      %p55 = scmp.eq.s32.totalorder %s10, 0
      %p56 = por %p54, %p55
      %p57 = scmp.ne.s32.totalorder %s46, %s49
      %p58 = scmp.eq.s32.totalorder %s15, 1
      %p59 = por %p57, %p58
      %p60 = scmp.ne.s32.totalorder %s49, %s50
      %p61 = scmp.eq.s32.totalorder %s15, 0
      %p62 = por %p60, %p61
      %p63 = scmp.ne.s32.totalorder %s49, %s50
      %p64 = scmp.eq.s32.totalorder %s16, 1
      %p65 = por %p63, %p64
      %p67 = scmp.ne.s32.totalorder %s50, %s66
      %p68 = scmp.eq.s32.totalorder %s16, 0
      %p69 = por %p67, %p68
      %p70 = scmp.le.s32.totalorder 1, %s10
      %p71 = scmp.lt.s32.totalorder %s10, 3
      %p72 = pnand %p70, %p71
      %p73 = pneg %p72
      // Predicated region
      $region9: #{tpu_custom_call.1} parent=5 // pred_check
        _
      $region10: #{tpu_custom_call.1} parent=5 // pred_check_branch
        %75 = sbr.rel (%p72) target = $region12
      $region11: #{tpu_custom_call.1} parent=5 // pred_region
        %s76 = ssub.s32 %s10, 1
      $region12: #{tpu_custom_call.1} parent=5 // pred_fallthru
        _
      %p77 = scmp.lt.s32.totalorder %s10, 2
      // Predicated region
      $region13: #{tpu_custom_call.1} parent=5 // pred_check
        %p78 = pneg %p77
      $region14: #{tpu_custom_call.1} parent=5 // pred_check_branch
        %80 = sbr.rel (%p78) target = $region16
      $region15: #{tpu_custom_call.1} parent=5 // pred_region
        // Predicated region
        $region17: #{tpu_custom_call.1} parent=15 // pred_check
          %p81 = pneg %p30
        $region18: #{tpu_custom_call.1} parent=15 // pred_check_branch
          %83 = sbr.rel (%p81) target = $region20
        $region19: #{tpu_custom_call.1} parent=15 // pred_region
          %s84 = sand.u32 %s20, 1
          %s85 = scalar_lea.sflag [#allocation3], %s84
          %s86 = sand.u32 %s20, 1
          %s87 = smul.addr %s86, 40
          %s88 = scalar_lea.vmem [#allocation2], %s87
          %s90 = ssub.s32 640, 640
          %91 = vsyncadd %s85, %s90
          %s92 = smul.addr %s10, 5
          %s93 = smul.addr %s92, 128
          %s94 = scalar_lea.hbm %s0, %s93
          %s95 = sshll.u32 %s88, 4
          %s96 = int_to_ptr.vmem [resolvable:$true] %s95
          %101 = dma.hbm_to_vmem [thread:$0]  %s94, 640, %s96, %s85, 128, 128, 8
        $region20: #{tpu_custom_call.1} parent=15 // pred_fallthru
          _
      $region16: #{tpu_custom_call.1} parent=5 // pred_fallthru
        _
      %p102 = scmp.le.s32.totalorder 1, %s10
      %p103 = scmp.lt.s32.totalorder %s10, 3
      %p104 = pnand %p102, %p103
      %p105 = pneg %p104
      // Predicated region
      $region21: #{tpu_custom_call.1} parent=5 // pred_check
        _
      $region22: #{tpu_custom_call.1} parent=5 // pred_check_branch
        %107 = sbr.rel (%p104) target = $region24
      $region23: #{tpu_custom_call.1} parent=5 // pred_region
        %s108 = ssub.s32 %s10, 1
        %s109 = sand.u32 %s23, 1
        %s110 = scalar_lea.sflag [#allocation3], %s109
        %s111 = sand.u32 %s23, 1
        %s112 = smul.addr %s111, 40
        %s113 = scalar_lea.vmem [#allocation2], %s112
        // Predicated region
        $region25: #{tpu_custom_call.1} parent=23 // pred_check
          %p114 = pneg %p36
        $region26: #{tpu_custom_call.1} parent=23 // pred_check_branch
          %116 = sbr.rel (%p114) target = $region28
        $region27: #{tpu_custom_call.1} parent=23 // pred_region
          %117 = dma.done %s110, 640
        $region28: #{tpu_custom_call.1} parent=23 // pred_fallthru
          _
        %s118 = sand.u32 %s23, 1
        %s119 = scalar_lea.sflag [#allocation3], %s118
        %s120 = sand.u32 %s23, 1
        %s121 = smul.addr %s120, 40
        %s122 = scalar_lea.vmem [#allocation2], %s121
        %p123 = pneg %p36
        %p124 = pneg %p33
        %p125 = pneg %p62
        %p126 = pneg %p59
        %p127 = scmp.lt.s32.totalorder %s15, 1
        %s128 = scalar_select %p127, %s15, 1
        %s129 = scalar_lea.vmem %s1, %s128
        %p130 = scmp.lt.s32.totalorder %s15, 1
        %s131 = scalar_select %p130, %s15, 1
        %s132 = scalar_lea.vmem %s1, %s131
        %v133 = vld [vmem:[%s113 + $0x4] sm:$0x1]
        %v134 = vld [vmem:[%s113 + $0xc] sm:$0x1]
        %v135 = vld [vmem:[%s113 + $0x14] sm:$0x1]
        %v136 = vld [vmem:[%s113 + $0x1c] sm:$0x1]
        %v137 = vld [vmem:[%s113 + $0x24] sm:$0x1]
        %v138 = vld [vmem:[%s113 + $0x5] sm:$0x7]
        %v139 = vld [vmem:[%s113 + $0xd] sm:$0x7]
        %v140 = vld [vmem:[%s113 + $0x15] sm:$0x7]
        %v141 = vld [vmem:[%s113 + $0x1d] sm:$0x7]
        %v142 = vld [vmem:[%s113 + $0x25] sm:$0x7]
        %v143 = vxor.u32 %v133, 2147483648
        %v144 = vxor.u32 %v134, 2147483648
        %v145 = vxor.u32 %v135, 2147483648
        %v146 = vxor.u32 %v136, 2147483648
        %v147 = vxor.u32 %v137, 2147483648
        %v148 = vmul.f32 %v143, 1.442695
        %v149 = vpow.pop %v148
        %v150 = vmul.f32 %v144, 1.442695
        %v151 = vpow.pop %v150
        %v152 = vmul.f32 %v145, 1.442695
        %v153 = vpow.pop %v152
        %v154 = vmul.f32 %v146, 1.442695
        %v155 = vpow.pop %v154
        %v156 = vmul.f32 %v147, 1.442695
        %v157 = vpow.pop %v156
        %v158 = vadd.f32 %v149, 1.0
        %v159 = vadd.f32 %v151, 1.0
        %v160 = vadd.f32 %v153, 1.0
        %v161 = vadd.f32 %v155, 1.0
        %v162 = vadd.f32 %v157, 1.0
        %v163 = vrcp.pop %v158
        %v164 = vmul.f32 1.0, %v163
        %v165 = vrcp.pop %v159
        %v166 = vmul.f32 1.0, %v165
        %v167 = vrcp.pop %v160
        %v168 = vmul.f32 1.0, %v167
        %v169 = vrcp.pop %v161
        %v170 = vmul.f32 1.0, %v169
        %v171 = vrcp.pop %v162
        %v172 = vmul.f32 1.0, %v171
        %vm173 = vcmask 518144
        %v174 = vsel %vm173, %v138, -inf
        %v175 = vrot.slane %v174, 4
        %v176 = vmax.f32 %v174, %v175
        %v177 = vrot.slane %v176, 2
        %v178 = vmax.f32 %v176, %v177
        %v179 = vrot.slane %v178, 1
        %v180 = vmax.f32 %v178, %v179
        %v181 = vsel %vm173, %v139, -inf
        %v182 = vrot.slane %v181, 4
        %v183 = vmax.f32 %v181, %v182
        %v184 = vrot.slane %v183, 2
        %v185 = vmax.f32 %v183, %v184
        %v186 = vrot.slane %v185, 1
        %v187 = vmax.f32 %v185, %v186
        %v188 = vsel %vm173, %v140, -inf
        %v189 = vrot.slane %v188, 4
        %v190 = vmax.f32 %v188, %v189
        %v191 = vrot.slane %v190, 2
        %v192 = vmax.f32 %v190, %v191
        %v193 = vrot.slane %v192, 1
        %v194 = vmax.f32 %v192, %v193
        %v195 = vsel %vm173, %v141, -inf
        %v196 = vrot.slane %v195, 4
        %v197 = vmax.f32 %v195, %v196
        %v198 = vrot.slane %v197, 2
        %v199 = vmax.f32 %v197, %v198
        %v200 = vrot.slane %v199, 1
        %v201 = vmax.f32 %v199, %v200
        %v202 = vsel %vm173, %v142, -inf
        %v203 = vrot.slane %v202, 4
        %v204 = vmax.f32 %v202, %v203
        %v205 = vrot.slane %v204, 2
        %v206 = vmax.f32 %v204, %v205
        %v207 = vrot.slane %v206, 1
        %v208 = vmax.f32 %v206, %v207
        %v209 = vsub.f32 %v138, %v180
        %v210 = vsub.f32 %v139, %v187
        %v211 = vsub.f32 %v140, %v194
        %v212 = vsub.f32 %v141, %v201
        %v213 = vsub.f32 %v142, %v208
        %v214 = vmul.f32 %v209, 1.442695
        %v215 = vpow.pop %v214
        %v216 = vmul.f32 %v210, 1.442695
        %v217 = vpow.pop %v216
        %v218 = vmul.f32 %v211, 1.442695
        %v219 = vpow.pop %v218
        %v220 = vmul.f32 %v212, 1.442695
        %v221 = vpow.pop %v220
        %v222 = vmul.f32 %v213, 1.442695
        %v223 = vpow.pop %v222
        %v224 = vsel %vm173, %v215, 0.0
        %v225 = vrot.slane %v224, 4
        %v226 = vadd.f32 %v224, %v225
        %v227 = vrot.slane %v226, 2
        %v228 = vadd.f32 %v226, %v227
        %v229 = vrot.slane %v228, 1
        %v230 = vadd.f32 %v228, %v229
        %v231 = vsel %vm173, %v217, 0.0
        %v232 = vrot.slane %v231, 4
        %v233 = vadd.f32 %v231, %v232
        %v234 = vrot.slane %v233, 2
        %v235 = vadd.f32 %v233, %v234
        %v236 = vrot.slane %v235, 1
        %v237 = vadd.f32 %v235, %v236
        %v238 = vsel %vm173, %v219, 0.0
        %v239 = vrot.slane %v238, 4
        %v240 = vadd.f32 %v238, %v239
        %v241 = vrot.slane %v240, 2
        %v242 = vadd.f32 %v240, %v241
        %v243 = vrot.slane %v242, 1
        %v244 = vadd.f32 %v242, %v243
        %v245 = vsel %vm173, %v221, 0.0
        %v246 = vrot.slane %v245, 4
        %v247 = vadd.f32 %v245, %v246
        %v248 = vrot.slane %v247, 2
        %v249 = vadd.f32 %v247, %v248
        %v250 = vrot.slane %v249, 1
        %v251 = vadd.f32 %v249, %v250
        %v252 = vsel %vm173, %v223, 0.0
        %v253 = vrot.slane %v252, 4
        %v254 = vadd.f32 %v252, %v253
        %v255 = vrot.slane %v254, 2
        %v256 = vadd.f32 %v254, %v255
        %v257 = vrot.slane %v256, 1
        %v258 = vadd.f32 %v256, %v257
        %v259 = vrcp.pop %v230
        %v260 = vrcp.pop %v237
        %v261 = vrcp.pop %v244
        %v262 = vrcp.pop %v251
        %v263 = vrcp.pop %v258
        %v264 = vmul.f32 %v215, %v259
        %v265 = vmul.f32 %v217, %v260
        %v266 = vmul.f32 %v219, %v261
        %v267 = vmul.f32 %v221, %v262
        %v268 = vmul.f32 %v223, %v263
        %v269 = vmul.f32 %v164, %v264
        %v270 = vmul.f32 %v166, %v265
        %v271 = vmul.f32 %v168, %v266
        %v272 = vmul.f32 %v170, %v267
        %v273 = vmul.f32 %v172, %v268
        %vm274 = vcmask 516096
        %v275 = vsel %vm274, %v269, -inf
        %276 = vmax.xlane.f32.xlu0 %v275
        %v277 = vpop.xlane.xlu0 %276
        %v278 = vsel %vm274, %v270, -inf
        %279 = vmax.xlane.f32.xlu0 %v278
        %v280 = vpop.xlane.xlu0 %279
        %v281 = vsel %vm274, %v271, -inf
        %282 = vmax.xlane.f32.xlu0 %v281
        %v283 = vpop.xlane.xlu0 %282
        %v284 = vsel %vm274, %v272, -inf
        %285 = vmax.xlane.f32.xlu0 %v284
        %v286 = vpop.xlane.xlu0 %285
        %v287 = vsel %vm274, %v273, -inf
        %288 = vmax.xlane.f32.xlu0 %v287
        %v289 = vpop.xlane.xlu0 %288
        %vm290 = vcmask 1040384
        %v291 = vsel %vm290, %v277, -inf
        %v292 = vsel %vm290, %v280, -inf
        %v293 = vsel %vm290, %v283, -inf
        %v294 = vsel %vm290, %v286, -inf
        %v295 = vsel %vm290, %v289, -inf
        %v296 = vmax.f32 %v291, %v295
        %v297 = vmax.f32 %v296, %v292
        %v298 = vmax.f32 %v293, %v294
        %v299 = vmax.f32 %v297, %v298
        %vm300 = vcmask 0
        %301 = vst.msk [vmem:[%s132] sm:$0x1] %vm300, %v299
        %p302 = scmp.lt.s32.totalorder %s15, 1
        %s303 = scalar_select %p302, %s15, 1
        %s304 = scalar_lea.vmem %s1, %s303
        // Predicated region
        $region29: #{tpu_custom_call.1} parent=23 // pred_check
          %p305 = pneg %p59
        $region30: #{tpu_custom_call.1} parent=23 // pred_check_branch
          %307 = sbr.rel (%p305) target = $region32
        $region31: #{tpu_custom_call.1} parent=23 // pred_region
          _
        $region32: #{tpu_custom_call.1} parent=23 // pred_fallthru
          _
      $region24: #{tpu_custom_call.1} parent=5 // pred_fallthru
        _
      %p308 = scmp.le.s32.totalorder 2, %s10
      // Predicated region
      $region33: #{tpu_custom_call.1} parent=5 // pred_check
        %p309 = pneg %p308
      $region34: #{tpu_custom_call.1} parent=5 // pred_check_branch
        %311 = sbr.rel (%p309) target = $region36
      $region35: #{tpu_custom_call.1} parent=5 // pred_region
        %s312 = ssub.s32 %s10, 2
        // Predicated region
        $region37: #{tpu_custom_call.1} parent=35 // pred_check
          %p313 = pneg %p65
        $region38: #{tpu_custom_call.1} parent=35 // pred_check_branch
          %315 = sbr.rel (%p313) target = $region40
        $region39: #{tpu_custom_call.1} parent=35 // pred_region
          %p316 = scmp.lt.s32.totalorder %s16, 1
          %s317 = scalar_select %p316, %s16, 1
          %s318 = scalar_lea.vmem %s1, %s317
        $region40: #{tpu_custom_call.1} parent=35 // pred_fallthru
          _
      $region36: #{tpu_custom_call.1} parent=5 // pred_fallthru
        _
    $region6: #{tpu_custom_call.1} parent=1 // loop_footer
      %s14 = sadd.s32 1, %s10
    $region7: #{tpu_custom_call.1} parent=1 // loop_footer_branch
      %9 = sbr.rel target = $region3
    $region8: #{tpu_custom_call.1} parent=1 // loop_exit
      _
    %319 = vsyncpa [#allocation3], 1
    %s320 = scalar_lea.sflag [#allocation3], 1
    %321 = vsyncpa %s320, 1

</llo_original>
